<compile_context>
chip_gen: v7x
topology: tpu7x:2x2x1
jax: 0.10.0
libtpu: 0.0.40
codegen_flags: <defaults>
</compile_context>

<pallas_src>
import functools
import math

import jax
import jax.numpy as jnp
from jax.experimental import pallas as pl
from jax.experimental.pallas import tpu as pltpu

# Per-buffer VMEM tile budget: 2 in-buffers + 2 out-buffers (+1 when the input
# pipeline is deepened) stays well inside the 32 MiB scoped-VMEM limit we
# request below on every generation.
_TILE_BUDGET_BYTES = 2 * 1024 * 1024
_VMEM_LIMIT_BYTES = 32 * 1024 * 1024
_LANE = 128
_ALIGN_CAP = 512              # first-pass cap on lane/sublane tiles (v5e vst/vreg pressure)
_SMALL_TILE_BYTES = 512 * 1024  # below this, deepen the input pipeline


def _sublane_pack(itemsize):
    return {1: 32, 2: 16, 4: 8}.get(itemsize, 8)


def _largest_divisor_leq(n, cap):
    cap = max(1, min(n, cap))
    for d in range(cap, 0, -1):
        if n % d == 0:
            return d
    return 1


def _merge_fixed_runs(shape, d1, d2):
    """Reshape-merge every maximal contiguous run of axes untouched by the swap.

    When the swap does not touch the last two axes at all, the original minor
    pair is kept un-merged so the in-block operation stays an identity copy
    (the block-level swap is then expressed purely by the output index_map).
    """
    n = len(shape)
    keep = {n - 2, n - 1} if d2 < n - 2 else set()
    groups, i = [], 0
    while i < n:
        if i in (d1, d2) or i in keep:
            groups.append((i,))
            i += 1
        else:
            j = i
            while j < n and j not in (d1, d2) and j not in keep:
                j += 1
            groups.append(tuple(range(i, j)))
            i = j
    new_shape = tuple(math.prod([shape[a] for a in g]) for g in groups)
    new_d1 = next(k for k, g in enumerate(groups) if g == (d1,))
    new_d2 = next(k for k, g in enumerate(groups) if g == (d2,))
    return new_shape, new_d1, new_d2


def _plan_tiles(shape, perm, itemsize, budget):
    """Pick per-axis block sizes under a per-buffer VMEM byte budget.

    Layout rules honoured for both the input block and the permuted output
    block: last block dim is a multiple of 128 (or the full dim), second-to-last
    is a multiple of the dtype sublane pack (or the full dim).
    """
    nw = len(shape)
    pack = _sublane_pack(itemsize)

    req = [1] * nw
    req[nw - 2] = max(req[nw - 2], pack)                # input sublane
    req[perm[nw - 2]] = max(req[perm[nw - 2]], pack)    # output sublane
    req[nw - 1] = max(req[nw - 1], _LANE)               # input lane
    req[perm[nw - 1]] = max(req[perm[nw - 1]], _LANE)   # output lane

    # Minimal legal tile (a full dim is always legal, even when < the multiple).
    bs = [min(shape[a], req[a]) if req[a] > 1 else 1 for a in range(nw)]

    def total_bytes():
        return itemsize * math.prod(bs)

    def try_grow(a, hi):
        dim, cur, r = shape[a], bs[a], req[a]
        hi = min(hi, dim)
        if cur >= hi:
            return False
        nxt = min(cur * 2, hi)
        if nxt < dim:
            nxt = (nxt // r) * r      # keep it a legal multiple unless full dim
        if nxt <= cur:
            return False
        if (total_bytes() // cur) * nxt > budget:
            return False
        bs[a] = nxt
        return True

    # Growth priority: output lane (lane-dense stores are the biggest lever),
    # input lane, then the sublane axes.
    order = []
    for a in (perm[nw - 1], nw - 1, nw - 2, perm[nw - 2]):
        if req[a] > 1 and a not in order:
            order.append(a)

    # Phase 1: round-robin doubling under a moderate cap; phase 2: lift the cap
    # to soak up leftover budget (e.g. a large merged trailing batch/lane axis).
    for cap in (_ALIGN_CAP, None):
        progress = True
        while progress:
            progress = False
            for a in order:
                hi = shape[a] if cap is None else cap
                if try_grow(a, hi):
                    progress = True

    # Phase 3: fold swap-invariant (batch-like) axes into the leftover budget,
    # innermost first, so shapes with small aligned dims still get big DMAs.
    for a in range(nw - 1, -1, -1):
        if req[a] == 1 and perm[a] == a:
            other = total_bytes() // bs[a]
            bs[a] = _largest_divisor_leq(shape[a], max(1, budget // other))

    return bs


def _transpose_kernel(perm, x_ref, o_ref):
    # Intra-block axis swap; the block-level swap is done by the output
    # BlockSpec index_map.
    o_ref[...] = jnp.transpose(x_ref[...], perm)


def _copy_kernel(x_ref, o_ref):
    # Both swapped axes have block size 1 -> the whole swap is expressed by the
    # output index_map; the body is a straight VMEM copy.
    o_ref[...] = x_ref[...]


def pallas_transpose(x, dim1, dim2, *, tile_budget_bytes=_TILE_BUDGET_BYTES):
    """Equivalent of torch.Tensor.transpose(dim1, dim2) as a Pallas TPU kernel."""
    ndim = x.ndim
    if ndim == 0:
        return x
    d1, d2 = dim1 % ndim, dim2 % ndim
    if d1 == d2:
        return x
    if d1 > d2:
        d1, d2 = d2, d1

    out_shape_true = list(x.shape)
    out_shape_true[d1], out_shape_true[d2] = out_shape_true[d2], out_shape_true[d1]
    out_shape_true = tuple(out_shape_true)

    if x.size == 0:
        return jnp.swapaxes(x, d1, d2)  # nothing to move

    # Merge contiguous runs of swap-invariant axes (free row-major reshape):
    # fewer grid dims and bigger DMA slabs.
    wshape, d1w, d2w = _merge_fixed_runs(x.shape, d1, d2)
    xw = x.reshape(wshape) if wshape != x.shape else x
    nw = len(wshape)

    perm = list(range(nw))
    perm[d1w], perm[d2w] = d2w, d1w
    perm = tuple(perm)
    out_shape_w = tuple(wshape[p] for p in perm)

    itemsize = jnp.dtype(x.dtype).itemsize
    bs = _plan_tiles(wshape, perm, itemsize, tile_budget_bytes)

    # cdiv + masked tail blocks for non-divisible dims (block shapes stay
    # 128/pack-multiples, so the layout rule is still satisfied).
    grid = tuple(int(pl.cdiv(wshape[a], bs[a])) for a in range(nw))
    in_block = tuple(bs)
    out_block = tuple(bs[perm[a]] for a in range(nw))

    def in_index_map(*g):
        return tuple(g)

    def out_index_map(*g):
        # Block-level swap: grid index of input axis perm[a] feeds output axis a.
        return tuple(g[perm[a]] for a in range(nw))

    block_bytes = itemsize * math.prod(bs)
    num_steps = math.prod(grid)
    in_spec_kwargs = {}
    if block_bytes <= _SMALL_TILE_BYTES and num_steps >= 4:
        # Tiny tiles: per-tile work is shorter than DMA issue + latency; a
        # 3-deep input pipeline keeps the DMA queue full.
        in_spec_kwargs["pipeline_mode"] = pl.Buffered(3)
    try:
        in_spec = pl.BlockSpec(in_block, in_index_map, **in_spec_kwargs)
    except TypeError:
        # Older jax without BlockSpec(pipeline_mode=...): fall back to default
        # double buffering.
        in_spec = pl.BlockSpec(in_block, in_index_map)

    if bs[d1w] == 1 and bs[d2w] == 1:
        kernel = _copy_kernel
    else:
        kernel = functools.partial(_transpose_kernel, perm)

    out_w = pl.pallas_call(
        kernel,
        out_shape=jax.ShapeDtypeStruct(out_shape_w, x.dtype),
        grid_spec=pltpu.PrefetchScalarGridSpec(
            num_scalar_prefetch=0,
            grid=grid,
            in_specs=[in_spec],
            out_specs=pl.BlockSpec(out_block, out_index_map),
        ),
        compiler_params=pltpu.CompilerParams(
            # Every grid step writes a disjoint output block -> all axes are
            # independent.  (Explicit CORE_PARALLEL / core_map sharding across
            # v7x's two TensorCores is left out for v5e/v6e portability.)
            dimension_semantics=("parallel",) * len(grid),
            # Raise v5e's 16 MiB scoped default so the 2 MiB tile budget
            # (2 in + 2 out buffers, +1 with Buffered(3)) always has headroom.
            vmem_limit_bytes=_VMEM_LIMIT_BYTES,
        ),
    )(xw)

    if out_w.shape != out_shape_true:
        out_w = out_w.reshape(out_shape_true)
    return out_w


if __name__ == "__main__":
    key = jax.random.PRNGKey(0)
    k1, k2, k3 = jax.random.split(key, 3)

    # 1) (batch, seq, hidden) with Transpose(1, 2): in-block minor-axis swap.
    x1 = jax.random.normal(k1, (2, 8, 32), dtype=jnp.float32)
    o1 = jax.block_until_ready(pallas_transpose(x1, 1, 2))
    r1 = jnp.swapaxes(x1, 1, 2)
    assert o1.shape == r1.shape and o1.dtype == r1.dtype
    assert jnp.array_equal(o1, r1), "mismatch vs jnp.swapaxes (dims 1,2)"

    # 2) Batch-axis swap (lane/sublane untouched): block-level swap + pure-copy
    #    body, tiny tiles -> exercises the deeper (Buffered) input pipeline.
    x2 = jax.random.normal(k2, (2, 4, 16, 16), dtype=jnp.float32)
    o2 = jax.block_until_ready(pallas_transpose(x2, 0, 1))
    r2 = jnp.swapaxes(x2, 0, 1)
    assert o2.shape == r2.shape and o2.dtype == r2.dtype
    assert jnp.array_equal(o2, r2), "mismatch vs jnp.swapaxes (dims 0,1)"

    # 3) Non-128-divisible dims with a deliberately small tile budget:
    #    exercises cdiv grids + masked tail blocks on both minor axes.
    x3 = jax.random.normal(k3, (2, 200, 160), dtype=jnp.float32)
    o3 = jax.block_until_ready(
        pallas_transpose(x3, -2, -1, tile_budget_bytes=64 * 1024))
    r3 = jnp.swapaxes(x3, -2, -1)
    assert o3.shape == r3.shape and o3.dtype == r3.dtype
    assert jnp.array_equal(o3, r3), "mismatch vs jnp.swapaxes (ragged dims)"

    print("KERNEL_OK")
</pallas_src>

<mosaic_0001>
module attributes {stable_mosaic.version = 11 : i64} {
  func.func @_transpose_kernel(%arg0: i32, %arg1: i32, %arg2: i32, %arg3: memref<2x8x32xf32, #tpu.memory_space<vmem>>, %arg4: memref<2x32x8xf32, #tpu.memory_space<vmem>>) attributes {dimension_semantics = [#tpu.dimension_semantics<parallel>, #tpu.dimension_semantics<parallel>, #tpu.dimension_semantics<parallel>], iteration_bounds = array<i64: 1, 1, 1>, scalar_prefetch = 0 : i64, scratch_operands = 0 : i64, tpu.core_type = #tpu.core_type<tc>, window_params = [{transform_indices = @transform_0, window_bounds = array<i64: 2, 8, 32>}, {transform_indices = @transform_1, window_bounds = array<i64: 2, 32, 8>}]} {
    %c0 = arith.constant 0 : index
    %c0_0 = arith.constant 0 : index
    %c0_1 = arith.constant 0 : index
    %0 = vector.load %arg3[%c0, %c0_0, %c0_1] : memref<2x8x32xf32, #tpu.memory_space<vmem>>, vector<2x8x32xf32>
    %1 = tpu.transpose %0, [0, 2, 1] : vector<2x8x32xf32> -> vector<2x32x8xf32>
    %c0_2 = arith.constant 0 : index
    %c0_3 = arith.constant 0 : index
    %c0_4 = arith.constant 0 : index
    %2 = vector.load %arg4[%c0_2, %c0_3, %c0_4] : memref<2x32x8xf32, #tpu.memory_space<vmem>>, vector<2x32x8xf32>
    tpu.vector_store %arg4[%c0_2, %c0_3, %c0_4], %1 {strides = array<i32>} : memref<2x32x8xf32, #tpu.memory_space<vmem>>, vector<2x32x8xf32>,
    return
  }
  func.func @transform_0(%arg0: i32, %arg1: i32, %arg2: i32) -> (i32, i32, i32) {
    %c0_i32 = arith.constant 0 : i32
    return %arg0, %arg1, %arg2 : i32, i32, i32
  }
  func.func @transform_1(%arg0: i32, %arg1: i32, %arg2: i32) -> (i32, i32, i32) {
    %c0_i32 = arith.constant 0 : i32
    return %arg0, %arg2, %arg1 : i32, i32, i32
  }
}

</mosaic_0001>

<llo_original>
// kernel: tpu_custom_call.1
$region0: #{tpu_custom_call.1}
  #allocation0 [shape = 'u32[]', space=smem, size = 0x4, offset = 0x4, fixed_abs, tag = 'smem constant byte address 0x4 - core index']
  #allocation1 [shape = 'u32[144,128]{1,0:T(1,128)}', space=vmem, size = 0x12000, scoped, tag = 'internal scratch']
  %s0 = inlined_call_operand.hbm [shape: f32[2,8,32], index: 0, kind: input, shape index: {}]
  %s1 = inlined_call_operand.vmem [shape: f32[2,32,8], index: 1, kind: output, shape index: {}]
  %s2 = sld [smem:[#allocation0]]
  $region18: #{tpu_custom_call.1} parent=0
    _
  %s4 = ssub.s32 1, %s2
  %s5 = scalar_select 0, %s4, %s2
  $region1: #{tpu_custom_call.1} parent=0
    #allocation2 [shape = 'u8[8192]{0}', space=vmem, size = 0x2000, scoped, tag = 'input window, operand 0, single buffered']
    #allocation3 [shape = 's32[1]{0}', space=sflag, size = 0x4, scoped, tag = 'scoped memory for tpu_custom_call.1']
    %6 = vsyncpa [#allocation3], 0
    // Predicated region
    $region2: #{tpu_custom_call.1} parent=1 // pred_check
      _
    $region3: #{tpu_custom_call.1} parent=1 // pred_check_branch
      %8 = sbr.rel (0) target = $region5
    $region4: #{tpu_custom_call.1} parent=1 // pred_region
      %s10 = ssub.s32 256, 256
      %11 = vsyncadd [#allocation3], %s10
      %s12 = sshll.u32 [#allocation2], 4
      %s13 = int_to_ptr.vmem [resolvable:$true] %s12
      %18 = dma.hbm_to_vmem [thread:$0]  %s0, 256, %s13, [#allocation3], 128, 128, 8
    $region5: #{tpu_custom_call.1} parent=1 // pred_fallthru
      _
    // Predicated region
    $region6: #{tpu_custom_call.1} parent=1 // pred_check
      _
    $region7: #{tpu_custom_call.1} parent=1 // pred_check_branch
      %20 = sbr.rel (0) target = $region9
    $region8: #{tpu_custom_call.1} parent=1 // pred_region
      %21 = dma.done [#allocation3], 256
    $region9: #{tpu_custom_call.1} parent=1 // pred_fallthru
      _
    %v22 = vld [vmem:[#allocation2] sm:$0xff]
    %v23 = vld [vmem:[#allocation2 + $0x8] sm:$0xff]
    %24 = vxpose.xlu0.b32.start [1/16] %v22, 128
    %25 = vxpose.xlu0.b32.cont [2/16] 0.0, 128
    %26 = vxpose.xlu0.b32.cont [3/16] 0.0, 128
    %27 = vxpose.xlu0.b32.cont [4/16] 0.0, 128
    %28 = vxpose.xlu0.b32.cont [5/16] 0.0, 128
    %29 = vxpose.xlu0.b32.cont [6/16] 0.0, 128
    %30 = vxpose.xlu0.b32.cont [7/16] 0.0, 128
    %31 = vxpose.xlu0.b32.cont [8/16] 0.0, 128
    %32 = vxpose.xlu0.b32.cont [9/16] 0.0, 128
    %33 = vxpose.xlu0.b32.cont [10/16] 0.0, 128
    %34 = vxpose.xlu0.b32.cont [11/16] 0.0, 128
    %35 = vxpose.xlu0.b32.cont [12/16] 0.0, 128
    %36 = vxpose.xlu0.b32.cont [13/16] 0.0, 128
    %37 = vxpose.xlu0.b32.cont [14/16] 0.0, 128
    %38 = vxpose.xlu0.b32.cont [15/16] 0.0, 128
    %39 = vxpose.xlu0.b32.end [16/16] 0.0, 128
    %v40 = vpop.trf.xlu0
    %v41 = vpop.trf.xlu0
    %v42 = vpop.trf.xlu0
    %v43 = vpop.trf.xlu0
    %v44 = vpop.trf.xlu0
    %v45 = vpop.trf.xlu0
    %v46 = vpop.trf.xlu0
    %v47 = vpop.trf.xlu0
    %v48 = vpop.trf.xlu0
    %v49 = vpop.trf.xlu0
    %v50 = vpop.trf.xlu0
    %v51 = vpop.trf.xlu0
    %v52 = vpop.trf.xlu0
    %v53 = vpop.trf.xlu0
    %v54 = vpop.trf.xlu0
    %v55 = vpop.trf.xlu0
    %56 = vxpose.xlu0.b32.start [1/16] %v23, 128
    %57 = vxpose.xlu0.b32.cont [2/16] 0.0, 128
    %58 = vxpose.xlu0.b32.cont [3/16] 0.0, 128
    %59 = vxpose.xlu0.b32.cont [4/16] 0.0, 128
    %60 = vxpose.xlu0.b32.cont [5/16] 0.0, 128
    %61 = vxpose.xlu0.b32.cont [6/16] 0.0, 128
    %62 = vxpose.xlu0.b32.cont [7/16] 0.0, 128
    %63 = vxpose.xlu0.b32.cont [8/16] 0.0, 128
    %64 = vxpose.xlu0.b32.cont [9/16] 0.0, 128
    %65 = vxpose.xlu0.b32.cont [10/16] 0.0, 128
    %66 = vxpose.xlu0.b32.cont [11/16] 0.0, 128
    %67 = vxpose.xlu0.b32.cont [12/16] 0.0, 128
    %68 = vxpose.xlu0.b32.cont [13/16] 0.0, 128
    %69 = vxpose.xlu0.b32.cont [14/16] 0.0, 128
    %70 = vxpose.xlu0.b32.cont [15/16] 0.0, 128
    %71 = vxpose.xlu0.b32.end [16/16] 0.0, 128
    %v72 = vpop.trf.xlu0
    %v73 = vpop.trf.xlu0
    %v74 = vpop.trf.xlu0
    %v75 = vpop.trf.xlu0
    %v76 = vpop.trf.xlu0
    %v77 = vpop.trf.xlu0
    %v78 = vpop.trf.xlu0
    %v79 = vpop.trf.xlu0
    %v80 = vpop.trf.xlu0
    %v81 = vpop.trf.xlu0
    %v82 = vpop.trf.xlu0
    %v83 = vpop.trf.xlu0
    %v84 = vpop.trf.xlu0
    %v85 = vpop.trf.xlu0
    %v86 = vpop.trf.xlu0
    %v87 = vpop.trf.xlu0
    %vm88 = vcmask 64512
    %89 = vst.msk [vmem:[%s1] sm:$0xff] %vm88, %v40
    %90 = vst.msk [vmem:[%s1 + $0x8] sm:$0xff] %vm88, %v41
    %91 = vst.msk [vmem:[%s1 + $0x10] sm:$0xff] %vm88, %v42
    %92 = vst.msk [vmem:[%s1 + $0x18] sm:$0xff] %vm88, %v43
    %93 = vst.msk [vmem:[%s1 + $0x20] sm:$0xff] %vm88, %v72
    %94 = vst.msk [vmem:[%s1 + $0x28] sm:$0xff] %vm88, %v73
    %95 = vst.msk [vmem:[%s1 + $0x30] sm:$0xff] %vm88, %v74
    %96 = vst.msk [vmem:[%s1 + $0x38] sm:$0xff] %vm88, %v75
    // Predicated region
    $region10: #{tpu_custom_call.1} parent=1 // pred_check
      _
    $region11: #{tpu_custom_call.1} parent=1 // pred_check_branch
      %98 = sbr.rel (0) target = $region13
    $region12: #{tpu_custom_call.1} parent=1 // pred_region
      _
    $region13: #{tpu_custom_call.1} parent=1 // pred_fallthru
      _
    // Predicated region
    $region14: #{tpu_custom_call.1} parent=1 // pred_check
      _
    $region15: #{tpu_custom_call.1} parent=1 // pred_check_branch
      %100 = sbr.rel (0) target = $region17
    $region16: #{tpu_custom_call.1} parent=1 // pred_region
      _
    $region17: #{tpu_custom_call.1} parent=1 // pred_fallthru
      _
    %101 = vsyncpa [#allocation3], 1

</llo_original>
